<compile_context>
chip_gen: v6e
topology: v6e:2x2x1
jax: 0.10.0
libtpu: 0.0.40
codegen_flags: <defaults>
</compile_context>

<pallas_src>
import functools
import math

import jax
import jax.numpy as jnp
from jax import lax
from jax.experimental import pallas as pl
from jax.experimental.pallas import tpu as pltpu

_LOG_EPS = math.log(1e-10)  # clamp matching the reference's +1e-10 inside log


def _int_power(v, p):
    """v ** p for a Python int p >= 0, via repeated squaring (VPU muls only)."""
    p = int(p)
    if p == 0:
        return jnp.ones_like(v)
    result = None
    base = v
    while p > 0:
        if p & 1:
            result = base if result is None else result * base
        p >>= 1
        if p:
            base = base * base
    return result


def _power(v, gamma):
    """v ** gamma; integer gamma -> repeated squaring, float gamma -> lax.pow."""
    if float(gamma) == int(gamma) and gamma >= 0:
        return _int_power(v, int(gamma))
    # Floor avoids log(0) inside the exp/log lowering of pow for saturated s.
    return lax.pow(jnp.maximum(v, 1e-30), jnp.float32(gamma))


def _focal_loss_kernel(x_ref, t_ref, o_ref, *, gamma, block_rows,
                       rows_in_last, need_mask):
    x = x_ref[...].astype(jnp.float32)
    t = t_ref[...].astype(jnp.float32)

    # Numerically stable log-sigmoid / softplus identity:
    #   sp = softplus(x) = log(1 + exp(x))
    #   log(sigmoid(x))     = x - sp
    #   log(1 - sigmoid(x)) = -sp
    #   sigmoid(x)          = exp(x - sp)
    sp = jnp.maximum(x, 0.0) + jnp.log(1.0 + jnp.exp(-jnp.abs(x)))
    # Clamp mirrors the reference's log(s + 1e-10) epsilon for saturated logits.
    log_s = jnp.maximum(x - sp, _LOG_EPS)
    log_1ms = jnp.maximum(-sp, _LOG_EPS)
    s = jnp.exp(x - sp)
    oms = 1.0 - s

    # Negative of the reference per-element loss; the sign and the 1/(B*C)
    # mean are folded into the wrapper's final scale.
    loss = ((t + t) * _power(oms, gamma) * log_s
            + (1.0 - t) * _power(s, gamma) * log_1ms)

    partial = jnp.sum(loss, axis=0, keepdims=True)

    if need_mask:
        last = pl.num_programs(0) - 1

        @pl.when(pl.program_id(0) != last)
        def _():
            o_ref[...] = partial

        # Only the last block pays for the tail mask; padded garbage rows are
        # killed by the select (NaN-safe) before the reduce.
        @pl.when(pl.program_id(0) == last)
        def _():
            rows = lax.broadcasted_iota(jnp.int32, (block_rows, 1), 0)
            masked = jnp.where(rows < rows_in_last, loss, 0.0)
            o_ref[...] = jnp.sum(masked, axis=0, keepdims=True)
    else:
        o_ref[...] = partial


def multilabel_focal_loss(inputs, targets, gamma=4, block_rows=None):
    """Mean multi-label focal loss over all elements of `inputs`/`targets`.

    Accepts narrow dtypes (bf16 inputs, int8/bool/bf16 targets); all math and
    the partial sums are f32.
    """
    assert inputs.shape == targets.shape
    assert inputs.ndim == 2, "expected (batch, num_labels)"
    B, C = inputs.shape

    sub_mults = {4: 8, 2: 16, 1: 32}
    it_x = jnp.dtype(inputs.dtype).itemsize
    it_t = jnp.dtype(targets.dtype).itemsize
    sub_mult = max(sub_mults.get(it_x, 8), sub_mults.get(it_t, 8))

    if block_rows is None:
        # ~2 MiB per HBM input tile (2 inputs x 2 pipeline buffers stays well
        # under scoped VMEM on v5e/v6e/v7x), capped so the f32 working set
        # inside the kernel is <= 4 MiB per array.
        rows_hbm = (2 * 1024 * 1024) // (C * max(it_x, it_t))
        rows_f32 = (4 * 1024 * 1024) // (C * 4)
        rows_fit = max(1, min(rows_hbm, rows_f32))
        if rows_fit >= B:
            block_rows = B          # one tile covers the whole batch
        else:
            block_rows = max(sub_mult, (rows_fit // sub_mult) * sub_mult)

    n_blocks = pl.cdiv(B, block_rows)
    need_mask = (B % block_rows) != 0
    rows_in_last = B - (n_blocks - 1) * block_rows

    kernel = functools.partial(
        _focal_loss_kernel,
        gamma=gamma, block_rows=block_rows,
        rows_in_last=rows_in_last, need_mask=need_mask,
    )

    cost = pl.CostEstimate(
        flops=21 * B * C,
        transcendentals=3 * B * C,
        bytes_accessed=B * C * (it_x + it_t) + n_blocks * C * 4,
    )

    partials = pl.pallas_call(
        kernel,
        out_shape=jax.ShapeDtypeStruct((n_blocks, C), jnp.float32),
        grid_spec=pltpu.PrefetchScalarGridSpec(
            num_scalar_prefetch=0,
            grid=(n_blocks,),
            in_specs=[
                pl.BlockSpec((block_rows, C), lambda i: (i, 0)),
                pl.BlockSpec((block_rows, C), lambda i: (i, 0)),
            ],
            out_specs=pl.BlockSpec((1, C), lambda i: (i, 0)),
        ),
        compiler_params=pltpu.CompilerParams(
            dimension_semantics=("parallel",),   # independent partial sums
            vmem_limit_bytes=32 * 1024 * 1024,
        ),
        cost_estimate=cost,
    )(inputs, targets)

    # Tiny (n_blocks, C) reduce + mean + sign fold in plain XLA.
    return jnp.sum(partials) * jnp.float32(-1.0 / (B * C))


def _reference(inputs, targets, gamma=4):
    """Direct transcription of the PyTorch module (with its 1e-10 epsilons)."""
    x = inputs.astype(jnp.float32)
    t = targets.astype(jnp.float32)
    s = jax.nn.sigmoid(x)
    pos = -t * (1.0 - s) ** gamma * jnp.log(s + 1e-10) * 2.0
    neg = -(1.0 - t) * s ** gamma * jnp.log(1.0 - s + 1e-10)
    return jnp.mean(pos + neg)


if __name__ == "__main__":
    key = jax.random.PRNGKey(0)
    k_in, k_tgt, k_in2, k_tgt2, k_in3, k_tgt3 = jax.random.split(key, 6)

    # Primary small test: tile-friendly shape, single block.
    B, C = 16, 128
    inputs = jax.random.normal(k_in, (B, C), dtype=jnp.float32)
    targets = (jax.random.uniform(k_tgt, (B, C)) > 0.5).astype(jnp.float32)

    loss = multilabel_focal_loss(inputs, targets, gamma=4)
    loss = jax.block_until_ready(loss)
    ref = _reference(inputs, targets, gamma=4)
    assert jnp.allclose(loss, ref, rtol=1e-4, atol=1e-6), (loss, ref)

    # Secondary test: batch not divisible by block_rows (exercises the
    # parallel per-block partial sums and the last-block tail mask).
    B2, C2 = 20, 128
    inputs2 = jax.random.normal(k_in2, (B2, C2), dtype=jnp.float32)
    targets2 = (jax.random.uniform(k_tgt2, (B2, C2)) > 0.5).astype(jnp.float32)

    loss2 = multilabel_focal_loss(inputs2, targets2, gamma=4, block_rows=8)
    loss2 = jax.block_until_ready(loss2)
    ref2 = _reference(inputs2, targets2, gamma=4)
    assert jnp.allclose(loss2, ref2, rtol=1e-4, atol=1e-6), (loss2, ref2)

    # Narrow-dtype test: bf16 logits + int8 targets (HBM-traffic reduction
    # path); kernel upcasts to f32 internally.
    B3, C3 = 24, 128
    inputs3 = jax.random.normal(k_in3, (B3, C3), dtype=jnp.float32).astype(jnp.bfloat16)
    targets3 = (jax.random.uniform(k_tgt3, (B3, C3)) > 0.5).astype(jnp.int8)

    loss3 = multilabel_focal_loss(inputs3, targets3, gamma=4)
    loss3 = jax.block_until_ready(loss3)
    ref3 = _reference(inputs3.astype(jnp.float32), targets3.astype(jnp.float32), gamma=4)
    assert jnp.allclose(loss3, ref3, rtol=1e-4, atol=1e-6), (loss3, ref3)

    print("KERNEL_OK")
</pallas_src>

<mosaic_0001>
module attributes {stable_mosaic.version = 11 : i64} {
  func.func @_focal_loss_kernel(%arg0: i32, %arg1: memref<16x128xf32, #tpu.memory_space<vmem>>, %arg2: memref<16x128xf32, #tpu.memory_space<vmem>>, %arg3: memref<1x128xf32, #tpu.memory_space<vmem>>) attributes {dimension_semantics = [#tpu.dimension_semantics<parallel>], iteration_bounds = array<i64: 1>, scalar_prefetch = 0 : i64, scratch_operands = 0 : i64, tpu.core_type = #tpu.core_type<tc>, window_params = [{transform_indices = @transform_0, window_bounds = array<i64: 16, 128>}, {transform_indices = @transform_1, window_bounds = array<i64: 16, 128>}, {transform_indices = @transform_2, window_bounds = array<i64: 1, 128>}]} {
    %c0 = arith.constant 0 : index
    %c0_0 = arith.constant 0 : index
    %0 = vector.load %arg1[%c0, %c0_0] : memref<16x128xf32, #tpu.memory_space<vmem>>, vector<16x128xf32>
    %c0_1 = arith.constant 0 : index
    %c0_2 = arith.constant 0 : index
    %1 = vector.load %arg2[%c0_1, %c0_2] : memref<16x128xf32, #tpu.memory_space<vmem>>, vector<16x128xf32>
    %cst = arith.constant 0.000000e+00 : f32
    %2 = vector.broadcast %cst : f32 to vector<16x128xf32>
    %3 = arith.maximumf %0, %2 : vector<16x128xf32>
    %4 = math.absf %0 : vector<16x128xf32>
    %cst_3 = arith.constant 0.000000e+00 : f32
    %5 = vector.broadcast %cst_3 : f32 to vector<16x128xf32>
    %6 = arith.subf %5, %4 : vector<16x128xf32>
    %7 = math.exp %6 : vector<16x128xf32>
    %cst_4 = arith.constant 1.000000e+00 : f32
    %8 = vector.broadcast %cst_4 : f32 to vector<16x128xf32>
    %9 = arith.addf %8, %7 : vector<16x128xf32>
    %10 = math.log %9 : vector<16x128xf32>
    %11 = arith.addf %3, %10 : vector<16x128xf32>
    %12 = arith.subf %0, %11 : vector<16x128xf32>
    %cst_5 = arith.constant -23.0258503 : f32
    %13 = vector.broadcast %cst_5 : f32 to vector<16x128xf32>
    %14 = arith.maximumf %12, %13 : vector<16x128xf32>
    %cst_6 = arith.constant 0.000000e+00 : f32
    %15 = vector.broadcast %cst_6 : f32 to vector<16x128xf32>
    %16 = arith.subf %15, %11 : vector<16x128xf32>
    %cst_7 = arith.constant -23.0258503 : f32
    %17 = vector.broadcast %cst_7 : f32 to vector<16x128xf32>
    %18 = arith.maximumf %16, %17 : vector<16x128xf32>
    %19 = arith.subf %0, %11 : vector<16x128xf32>
    %20 = math.exp %19 : vector<16x128xf32>
    %cst_8 = arith.constant 1.000000e+00 : f32
    %21 = vector.broadcast %cst_8 : f32 to vector<16x128xf32>
    %22 = arith.subf %21, %20 : vector<16x128xf32>
    %23 = arith.addf %1, %1 : vector<16x128xf32>
    %24 = arith.mulf %22, %22 : vector<16x128xf32>
    %25 = arith.mulf %24, %24 : vector<16x128xf32>
    %26 = arith.mulf %23, %25 : vector<16x128xf32>
    %27 = arith.mulf %26, %14 : vector<16x128xf32>
    %cst_9 = arith.constant 1.000000e+00 : f32
    %28 = vector.broadcast %cst_9 : f32 to vector<16x128xf32>
    %29 = arith.subf %28, %1 : vector<16x128xf32>
    %30 = arith.mulf %20, %20 : vector<16x128xf32>
    %31 = arith.mulf %30, %30 : vector<16x128xf32>
    %32 = arith.mulf %29, %31 : vector<16x128xf32>
    %33 = arith.mulf %32, %18 : vector<16x128xf32>
    %34 = arith.addf %27, %33 : vector<16x128xf32>
    %cst_10 = arith.constant dense<0.000000e+00> : vector<128xf32>
    %35 = vector.multi_reduction <add>, %34, %cst_10 [0] : vector<16x128xf32> to vector<128xf32>
    %36 = vector.shape_cast %35 : vector<128xf32> to vector<1x128xf32>
    %c0_11 = arith.constant 0 : index
    %c0_12 = arith.constant 0 : index
    %37 = vector.load %arg3[%c0_11, %c0_12] : memref<1x128xf32, #tpu.memory_space<vmem>>, vector<1x128xf32>
    tpu.vector_store %arg3[%c0_11, %c0_12], %36 {strides = array<i32>} : memref<1x128xf32, #tpu.memory_space<vmem>>, vector<1x128xf32>,
    return
  }
  func.func @transform_0(%arg0: i32) -> (i32, i32) {
    %c0_i32 = arith.constant 0 : i32
    %c0_i32_0 = arith.constant 0 : i32
    return %arg0, %c0_i32 : i32, i32
  }
  func.func @transform_1(%arg0: i32) -> (i32, i32) {
    %c0_i32 = arith.constant 0 : i32
    %c0_i32_0 = arith.constant 0 : i32
    return %arg0, %c0_i32 : i32, i32
  }
  func.func @transform_2(%arg0: i32) -> (i32, i32) {
    %c0_i32 = arith.constant 0 : i32
    %c0_i32_0 = arith.constant 0 : i32
    return %arg0, %c0_i32 : i32, i32
  }
}

</mosaic_0001>

<llo_original>
// kernel: tpu_custom_call.1
$region0: #{tpu_custom_call.1}
  #allocation0 [shape = 'u32[]', space=smem, size = 0x4, offset = 0x4, fixed_abs, tag = 'smem constant byte address 0x4 - core index']
  #allocation1 [shape = 'u32[144,128]{1,0:T(1,128)}', space=vmem, size = 0x12000, scoped, tag = 'internal scratch']
  %s0 = inlined_call_operand.hbm [shape: f32[16,128], index: 0, kind: input, shape index: {}]
  %s1 = inlined_call_operand.hbm [shape: f32[16,128], index: 1, kind: input, shape index: {}]
  %s2 = inlined_call_operand.hbm [shape: f32[1,128], index: 2, kind: output, shape index: {}]
  %s3 = sld [smem:[#allocation0]]
  $region26: #{tpu_custom_call.1} parent=0
    _
  %s5 = ssub.s32 1, %s3
  %s6 = scalar_select 0, %s5, %s3
  $region1: #{tpu_custom_call.1} parent=0
    #allocation2 [shape = 'u8[8192]{0}', space=vmem, size = 0x2000, scoped, tag = 'input window, operand 0, single buffered']
    #allocation3 [shape = 's32[1]{0}', space=sflag, size = 0x4, scoped, tag = 'scoped memory for tpu_custom_call.1']
    #allocation4 [shape = 's32[1]{0}', space=sflag, size = 0x4, scoped, tag = 'scoped memory for tpu_custom_call.1']
    #allocation5 [shape = 'u8[8192]{0}', space=vmem, size = 0x2000, scoped, tag = 'input window, operand 1, single buffered']
    #allocation6 [shape = 's32[1]{0}', space=sflag, size = 0x4, scoped, tag = 'scoped memory for tpu_custom_call.1']
    #allocation7 [shape = 'u8[512]{0}', space=vmem, size = 0x400, scoped, tag = 'output window, operand 0, single buffered']
    %7 = vsyncpa [#allocation3], 0
    %8 = vsyncpa [#allocation6], 0
    %9 = vsyncpa [#allocation4], 0
    // Predicated region
    $region2: #{tpu_custom_call.1} parent=1 // pred_check
      _
    $region3: #{tpu_custom_call.1} parent=1 // pred_check_branch
      %11 = sbr.rel (0) target = $region5
    $region4: #{tpu_custom_call.1} parent=1 // pred_region
      %s13 = ssub.s32 256, 256
      %14 = vsyncadd [#allocation3], %s13
      %s15 = sshll.u32 [#allocation2], 4
      %s16 = int_to_ptr.vmem [resolvable:$true] %s15
      %21 = dma.hbm_to_vmem [thread:$0]  %s0, 256, %s16, [#allocation3], 128, 128, 8
    $region5: #{tpu_custom_call.1} parent=1 // pred_fallthru
      _
    // Predicated region
    $region6: #{tpu_custom_call.1} parent=1 // pred_check
      _
    $region7: #{tpu_custom_call.1} parent=1 // pred_check_branch
      %23 = sbr.rel (0) target = $region9
    $region8: #{tpu_custom_call.1} parent=1 // pred_region
      %s25 = ssub.s32 256, 256
      %26 = vsyncadd [#allocation6], %s25
      %s27 = sshll.u32 [#allocation5], 4
      %s28 = int_to_ptr.vmem [resolvable:$true] %s27
      %33 = dma.hbm_to_vmem [thread:$0]  %s1, 256, %s28, [#allocation6], 128, 128, 8
    $region9: #{tpu_custom_call.1} parent=1 // pred_fallthru
      _
    // Predicated region
    $region10: #{tpu_custom_call.1} parent=1 // pred_check
      _
    $region11: #{tpu_custom_call.1} parent=1 // pred_check_branch
      %35 = sbr.rel (0) target = $region13
    $region12: #{tpu_custom_call.1} parent=1 // pred_region
      %36 = dma.done [#allocation3], 256
    $region13: #{tpu_custom_call.1} parent=1 // pred_fallthru
      _
    // Predicated region
    $region14: #{tpu_custom_call.1} parent=1 // pred_check
      _
    $region15: #{tpu_custom_call.1} parent=1 // pred_check_branch
      %38 = sbr.rel (0) target = $region17
    $region16: #{tpu_custom_call.1} parent=1 // pred_region
      %39 = dma.done [#allocation6], 256
    $region17: #{tpu_custom_call.1} parent=1 // pred_fallthru
      _
    %v40 = vld [vmem:[#allocation2] sm:$0xff]
    %v41 = vld [vmem:[#allocation2 + $0x8] sm:$0xff]
    %v42 = vld [vmem:[#allocation5] sm:$0xff]
    %v43 = vld [vmem:[#allocation5 + $0x8] sm:$0xff]
    %v44 = vmax.f32 %v40, 0.0
    %v45 = vmax.f32 %v41, 0.0
    %v46 = vand.u32 2147483647, %v40
    %v47 = vand.u32 2147483647, %v41
    %v48 = vsub.f32 0.0, %v46
    %v49 = vsub.f32 0.0, %v47
    %v50 = vmul.f32 %v48, 1.442695
    %v51 = vpow.pop %v50
    %v52 = vmul.f32 %v49, 1.442695
    %v53 = vpow.pop %v52
    %v54 = vadd.f32 %v51, 1.0
    %v55 = vadd.f32 %v53, 1.0
    %v56 = vlog2.pop %v54
    %v57 = vmul.f32 %v56, 0.6931472
    %v58 = vlog2.pop %v55
    %v59 = vmul.f32 %v58, 0.6931472
    %v60 = vadd.f32 %v44, %v57
    %v61 = vadd.f32 %v45, %v59
    %v62 = vsub.f32 %v40, %v60
    %v63 = vsub.f32 %v41, %v61
    %v64 = vmax.f32 %v62, -23.02585
    %v65 = vmax.f32 %v63, -23.02585
    %v66 = vsub.f32 0.0, %v60
    %v67 = vsub.f32 0.0, %v61
    %v68 = vmax.f32 %v66, -23.02585
    %v69 = vmax.f32 %v67, -23.02585
    %v70 = vmul.f32 %v62, 1.442695
    %v71 = vpow.pop %v70
    %v72 = vmul.f32 %v63, 1.442695
    %v73 = vpow.pop %v72
    %v74 = vsub.f32 1.0, %v71
    %v75 = vsub.f32 1.0, %v73
    %v76 = vadd.f32 %v42, %v42
    %v77 = vadd.f32 %v43, %v43
    %v78 = vmul.f32 %v74, %v74
    %v79 = vmul.f32 %v75, %v75
    %v80 = vmul.f32 %v78, %v78
    %v81 = vmul.f32 %v79, %v79
    %v82 = vmul.f32 %v76, %v80
    %v83 = vmul.f32 %v77, %v81
    %v84 = vmul.f32 %v82, %v64
    %v85 = vmul.f32 %v83, %v65
    %v86 = vsub.f32 1.0, %v42
    %v87 = vsub.f32 1.0, %v43
    %v88 = vmul.f32 %v71, %v71
    %v89 = vmul.f32 %v73, %v73
    %v90 = vmul.f32 %v88, %v88
    %v91 = vmul.f32 %v89, %v89
    %v92 = vmul.f32 %v86, %v90
    %v93 = vmul.f32 %v87, %v91
    %v94 = vmul.f32 %v92, %v68
    %v95 = vmul.f32 %v93, %v69
    %v96 = vadd.f32 %v84, %v94
    %v97 = vadd.f32 %v85, %v95
    %v98 = vadd.f32 %v96, %v97
    %v99 = vrot.slane %v98, 4
    %v100 = vadd.f32 %v98, %v99
    %v101 = vrot.slane %v100, 2
    %v102 = vadd.f32 %v100, %v101
    %v103 = vrot.slane %v102, 1
    %v104 = vadd.f32 %v102, %v103
    %105 = vst [vmem:[#allocation7] sm:$0x1] %v104
    // Predicated region
    $region18: #{tpu_custom_call.1} parent=1 // pred_check
      _
    $region19: #{tpu_custom_call.1} parent=1 // pred_check_branch
      %107 = sbr.rel (0) target = $region21
    $region20: #{tpu_custom_call.1} parent=1 // pred_region
      %s109 = ssub.s32 16, 16
      %110 = vsyncadd [#allocation4], %s109
      %s112 = sshll.u32 [#allocation7], 4
      %s113 = int_to_ptr.vmem [resolvable:$true] %s112
      %115 = dma.vmem_to_hbm [thread:$0]  %s113, 16, %s2, [#allocation4]
    $region21: #{tpu_custom_call.1} parent=1 // pred_fallthru
      _
    // Predicated region
    $region22: #{tpu_custom_call.1} parent=1 // pred_check
      _
    $region23: #{tpu_custom_call.1} parent=1 // pred_check_branch
      %117 = sbr.rel (0) target = $region25
    $region24: #{tpu_custom_call.1} parent=1 // pred_region
      %118 = dma.done [#allocation4], 16
    $region25: #{tpu_custom_call.1} parent=1 // pred_fallthru
      _
    %119 = vsyncpa [#allocation3], 1
    %120 = vsyncpa [#allocation6], 1
    %121 = vsyncpa [#allocation4], 1

</llo_original>
